<compile_context>
chip_gen: v5e
topology: v5e:2x2
jax: 0.10.0
libtpu: 0.0.40
codegen_flags: <defaults>
</compile_context>

<pallas_src>
import functools

import jax
import jax.numpy as jnp
from jax import lax
from jax.experimental import pallas as pl
from jax.experimental.pallas import tpu as pltpu


def _device_config():
    """Per-generation VMEM limit and whether bf16 exp is profitable."""
    try:
        kind = jax.devices()[0].device_kind.lower()
    except Exception:  # pragma: no cover - defensive
        kind = ""
    if "v7" in kind or "tpu7" in kind:
        vmem_limit = 48 * 1024 * 1024        # 64 MiB physical per TC on v7x
    elif "v5" in kind or "v6" in kind:
        vmem_limit = 100 * 1024 * 1024       # 128 MiB physical on v5e/v6e
    else:
        vmem_limit = 64 * 1024 * 1024        # unknown: conservative middle ground
    exp_bf16 = ("v6" in kind) or ("v7" in kind) or ("tpu7" in kind)
    return vmem_limit, exp_bf16


def _choose_tiles(n_pad, c, vmem_limit_bytes):
    """Pick (TQ, TK): 128-multiples dividing n_pad, fitting a VMEM budget."""
    budget = int(0.70 * vmem_limit_bytes)

    def step_bytes(tq, tk):
        blocks = 2 * ((c + 1) * tk * 2) * 2          # A + Bf key blocks, bf16, 2-buffered
        blocks += 2 * (c + 1) * tq * 4               # f32 query/residual block, 2-buffered
        blocks += 2 * c * tq * 4                     # f32 output block, 2-buffered
        scratch = (c + 1) * tq * 4 + (c + 1) * tq * 2 + tq * 4   # acc + bq_bf16 + m
        temps = 12 * tk * tq                         # s_t, (s_t - m), p (f32 worst case)
        return blocks + scratch + temps

    tq_cands = [t for t in (2048, 1024, 512, 256, 128) if t <= n_pad and n_pad % t == 0]
    tk_cands = [t for t in (4096, 2048, 1024, 512, 256, 128)
                if t <= n_pad and n_pad % t == 0]

    # Phase 1: whole key axis resident with the largest query tile (best HBM reuse).
    tq_full = tq_cands[0]
    if step_bytes(tq_full, n_pad) <= budget:
        return tq_full, n_pad
    # Phase 2: tile the key axis (online softmax); keep TQ as large as fits,
    # then TK as large as fits for that TQ.
    for tq in tq_cands:
        for tk in tk_cands:
            if step_bytes(tq, tk) <= budget:
                return tq, tk
    # Phase 3: minimum tiles (rely on the vmem limit for extreme channel counts).
    return 128, 128


def _msffm_kernel(a_ref, b_ref, bq_ref, out_ref, m_scr, acc_scr, bqbf_scr,
                  *, exp_bf16):
    """One (batch, query-tile, key-tile) grid step.

    a_ref   : (1, C+1, TK) bf16   [A ; key-pad bias row]   -- key columns
    b_ref   : (1, C+1, TK) bf16   [Bf ; ones row]          -- key columns
    bq_ref  : (1, C+1, TQ) f32    [Bf ; ones row]          -- query columns (residual)
    out_ref : (1, C,   TQ) f32
    m_scr   : (1, TQ)      f32    running max over keys
    acc_scr : (C+1, TQ)    f32    rows 0..C-1: unnormalized L ; row C: denominator
    bqbf_scr: (C+1, TQ)    bf16   bf16 copy of the query block (MXU operand)
    """
    k = pl.program_id(2)

    @pl.when(k == 0)
    def _():
        m_scr[...] = jnp.full_like(m_scr, -jnp.inf)
        acc_scr[...] = jnp.zeros_like(acc_scr)
        bqbf_scr[...] = bq_ref[0].astype(jnp.bfloat16)

    a = a_ref[0]          # (C+1, TK) bf16
    b_keys = b_ref[0]     # (C+1, TK) bf16
    bq = bqbf_scr[...]    # (C+1, TQ) bf16

    # S_T[m, n] = sum_c A[c, m] * Bf[c, n]  (+ key-pad bias via the trailing rows)
    # Keys on the sublane axis, queries on the lane axis -> (TK, TQ).
    s_t = lax.dot_general(
        a, bq,
        dimension_numbers=(((0,), (0,)), ((), ())),
        preferred_element_type=jnp.float32,
    )

    m_prev = m_scr[...]                                               # (1, TQ)
    m_new = jnp.maximum(m_prev, jnp.max(s_t, axis=0, keepdims=True))  # (1, TQ)
    alpha = jnp.exp(m_prev - m_new)                                   # (1, TQ)

    if exp_bf16:
        # bf16 EUP on v6e/v7x: ~2x transcendental throughput, no extra f32 temp.
        p = jnp.exp((s_t - m_new).astype(jnp.bfloat16))               # (TK, TQ) bf16
    else:
        # v5e / unknown: keep element-wise math in f32, cast only the MXU operand.
        p = jnp.exp(s_t - m_new).astype(jnp.bfloat16)

    # [Bf ; 1] @ P: rows 0..C-1 = this key tile's unnormalized L contribution,
    # row C = per-query column sums (softmax denominator) -- one MXU op for both.
    l_full = jnp.dot(b_keys, p, preferred_element_type=jnp.float32)   # (C+1, TQ)

    acc_scr[...] = alpha * acc_scr[...] + l_full
    m_scr[...] = m_new

    @pl.when(k == pl.num_programs(2) - 1)
    def _():
        c = out_ref.shape[1]
        acc = acc_scr[...]
        inv = pl.reciprocal(acc[c:c + 1, :], approx=True)             # (1, TQ)
        # O = Bf + L  (residual in f32 from the query block; deferred normalization).
        out_ref[0] = (bq_ref[0][:c, :] + acc[:c, :] * inv).astype(out_ref.dtype)


@jax.jit
def msffm_attention(x, w_low, b_low, w_high, b_high):
    """x = (high_level_feat, low_level_feat), NCHW; conv weights are (C, C, 1, 1)."""
    high_feat, low_feat = x[0], x[1]
    bsz, c, h, w = high_feat.shape

    # Bilinear resize (align_corners=False, no antialias) when the low-level map is larger.
    if low_feat.shape[2] > h or low_feat.shape[3] > w:
        low_feat = jax.image.resize(
            low_feat, (low_feat.shape[0], low_feat.shape[1], h, w),
            method="bilinear", antialias=False)

    n = h * w
    n_pad = ((n + 127) // 128) * 128
    pad = n_pad - n

    # 1x1 convolutions hoisted out of the kernel (computed once, fused by XLA).
    low2 = low_feat.reshape(bsz, c, n).astype(jnp.float32)
    high2 = high_feat.reshape(bsz, c, n).astype(jnp.float32)
    a_f32 = jnp.einsum("oc,bcn->bon", w_low.reshape(c, c).astype(jnp.float32), low2) \
        + b_low.reshape(1, c, 1).astype(jnp.float32)
    bf_f32 = jnp.einsum("oc,bcn->bon", w_high.reshape(c, c).astype(jnp.float32), high2) \
        + b_high.reshape(1, c, 1).astype(jnp.float32)

    if pad:
        a_f32 = jnp.pad(a_f32, ((0, 0), (0, 0), (0, pad)))
        bf_f32 = jnp.pad(bf_f32, ((0, 0), (0, 0), (0, pad)))

    # Trailing rows: key-pad bias on A (picked up by the ones row of the queries) and
    # ones on Bf (produces the softmax denominator from the second matmul).
    key_bias = jnp.where(jnp.arange(n_pad) < n, 0.0, -1e9).astype(jnp.float32)
    key_bias = jnp.broadcast_to(key_bias[None, None, :], (bsz, 1, n_pad))
    ones_row = jnp.ones((bsz, 1, n_pad), jnp.float32)

    a_aug = jnp.concatenate([a_f32, key_bias], axis=1).astype(jnp.bfloat16)
    b_aug = jnp.concatenate([bf_f32, ones_row], axis=1).astype(jnp.bfloat16)
    bq_aug = jnp.concatenate([bf_f32, ones_row], axis=1)          # f32 queries + residual

    vmem_limit, exp_bf16 = _device_config()
    tq, tk = _choose_tiles(n_pad, c, vmem_limit)
    nq, nk = n_pad // tq, n_pad // tk

    cost = pl.CostEstimate(
        flops=int(bsz * 4 * (c + 1) * n_pad * n_pad),
        transcendentals=int(bsz * n_pad * n_pad),
        bytes_accessed=int(bsz * (nq * 2 * (c + 1) * n_pad * 2     # key streams per q-tile
                                  + (c + 1) * n_pad * 4            # f32 query stream
                                  + c * n_pad * 4)),               # output
    )

    out = pl.pallas_call(
        functools.partial(_msffm_kernel, exp_bf16=exp_bf16),
        out_shape=jax.ShapeDtypeStruct((bsz, c, n_pad), jnp.float32),
        grid_spec=pltpu.PrefetchScalarGridSpec(
            num_scalar_prefetch=0,
            grid=(bsz, nq, nk),
            in_specs=[
                pl.BlockSpec((1, c + 1, tk), lambda b, q, k: (b, 0, k)),   # A   (keys)
                pl.BlockSpec((1, c + 1, tk), lambda b, q, k: (b, 0, k)),   # Bf  (keys)
                pl.BlockSpec((1, c + 1, tq), lambda b, q, k: (b, 0, q)),   # Bf  (queries, f32)
            ],
            out_specs=pl.BlockSpec((1, c, tq), lambda b, q, k: (b, 0, q)),
            scratch_shapes=[
                pltpu.VMEM((1, tq), jnp.float32),        # running max
                pltpu.VMEM((c + 1, tq), jnp.float32),    # acc: L_un rows + denominator row
                pltpu.VMEM((c + 1, tq), jnp.bfloat16),   # bf16 copy of the query block
            ],
        ),
        compiler_params=pltpu.CompilerParams(
            dimension_semantics=("parallel", "parallel", "arbitrary"),
            vmem_limit_bytes=vmem_limit,
        ),
        cost_estimate=cost,
    )(a_aug, b_aug, bq_aug)

    return out[:, :, :n].reshape(bsz, c, h, w)


def _reference(x_high, x_low, w_low, b_low, w_high, b_high):
    """Pure-JAX f32 reference matching the PyTorch module."""
    bsz, c, h, w = x_high.shape
    low = x_low
    if low.shape[2] > h or low.shape[3] > w:
        low = jax.image.resize(low, (bsz, c, h, w), method="bilinear", antialias=False)
    a = jnp.einsum("oc,bchw->bohw", w_low.reshape(c, c), low) + b_low.reshape(1, c, 1, 1)
    bf = jnp.einsum("oc,bchw->bohw", w_high.reshape(c, c), x_high) + b_high.reshape(1, c, 1, 1)
    n = h * w
    p = a.reshape(bsz, c, n)
    q = bf.reshape(bsz, c, n)
    s = jax.nn.softmax(jnp.einsum("bcn,bcm->bnm", q, p), axis=-1)
    l = jnp.einsum("bcm,bnm->bcn", q, s)
    return (q + l).reshape(bsz, c, h, w)


if __name__ == "__main__":
    key = jax.random.PRNGKey(0)
    k1, k2, k3, k4, k5, k6 = jax.random.split(key, 6)

    bsz, c = 2, 4
    h, w = 16, 16

    # x[0] = high-level feature map, x[1] = larger low-level feature map.
    x_high = jax.random.normal(k1, (bsz, c, h, w), dtype=jnp.float32)
    x_low = jax.random.normal(k2, (bsz, c, 2 * h, 2 * w), dtype=jnp.float32)

    # Deterministic synthetic parameters (nn.Conv2d(C, C, kernel_size=1) shapes).
    w_low = 0.1 * jax.random.normal(k3, (c, c, 1, 1), dtype=jnp.float32)
    b_low = 0.1 * jax.random.normal(k4, (c,), dtype=jnp.float32)
    w_high = 0.1 * jax.random.normal(k5, (c, c, 1, 1), dtype=jnp.float32)
    b_high = 0.1 * jax.random.normal(k6, (c,), dtype=jnp.float32)

    out = msffm_attention((x_high, x_low), w_low, b_low, w_high, b_high)
    jax.block_until_ready(out)
    assert out.shape == (bsz, c, h, w)

    # Loose tolerance: bf16 matmul operands + approx reciprocal vs. f32 reference.
    ref = _reference(x_high, x_low, w_low, b_low, w_high, b_high)
    max_err = float(jnp.max(jnp.abs(out - ref)))
    assert max_err == max_err and max_err < 5e-2, f"max abs err {max_err}"

    print("KERNEL_OK")
</pallas_src>

<mosaic_0001>
module attributes {stable_mosaic.version = 11 : i64} {
  func.func @_msffm_kernel(%arg0: i32, %arg1: i32, %arg2: i32, %arg3: memref<1x5x256xbf16, #tpu.memory_space<vmem>>, %arg4: memref<1x5x256xbf16, #tpu.memory_space<vmem>>, %arg5: memref<1x5x256xf32, #tpu.memory_space<vmem>>, %arg6: memref<1x4x256xf32, #tpu.memory_space<vmem>>, %arg7: memref<1x256xf32, #tpu.memory_space<vmem>>, %arg8: memref<5x256xf32, #tpu.memory_space<vmem>>, %arg9: memref<5x256xbf16, #tpu.memory_space<vmem>>) attributes {dimension_semantics = [#tpu.dimension_semantics<parallel>, #tpu.dimension_semantics<parallel>, #tpu.dimension_semantics<arbitrary>], iteration_bounds = array<i64: 2, 1, 1>, scalar_prefetch = 0 : i64, scratch_operands = 3 : i64, tpu.core_type = #tpu.core_type<tc>, window_params = [{transform_indices = @transform_0, window_bounds = array<i64: 1, 5, 256>}, {transform_indices = @transform_1, window_bounds = array<i64: 1, 5, 256>}, {transform_indices = @transform_2, window_bounds = array<i64: 1, 5, 256>}, {transform_indices = @transform_3, window_bounds = array<i64: 1, 4, 256>}]} {
    %c0_i32 = arith.constant 0 : i32
    %0 = arith.cmpi eq, %arg2, %c0_i32 : i32
    %1 = arith.extui %0 : i1 to i32
    %c0_i32_0 = arith.constant 0 : i32
    %2 = arith.cmpi ne, %1, %c0_i32_0 : i32
    scf.if %2 {
      %cst_20 = arith.constant 0xFF800000 : f32
      %29 = vector.broadcast %cst_20 : f32 to vector<1x256xf32>
      %c0_21 = arith.constant 0 : index
      %c0_22 = arith.constant 0 : index
      %30 = vector.load %arg7[%c0_21, %c0_22] : memref<1x256xf32, #tpu.memory_space<vmem>>, vector<1x256xf32>
      tpu.vector_store %arg7[%c0_21, %c0_22], %29 {strides = array<i32>} : memref<1x256xf32, #tpu.memory_space<vmem>>, vector<1x256xf32>,
      %cst_23 = arith.constant 0.000000e+00 : f32
      %31 = vector.broadcast %cst_23 : f32 to vector<5x256xf32>
      %c0_24 = arith.constant 0 : index
      %c0_25 = arith.constant 0 : index
      %32 = vector.load %arg8[%c0_24, %c0_25] : memref<5x256xf32, #tpu.memory_space<vmem>>, vector<5x256xf32>
      tpu.vector_store %arg8[%c0_24, %c0_25], %31 {strides = array<i32>} : memref<5x256xf32, #tpu.memory_space<vmem>>, vector<5x256xf32>,
      %c0_26 = arith.constant 0 : index
      %c0_27 = arith.constant 0 : index
      %c0_28 = arith.constant 0 : index
      %33 = vector.load %arg5[%c0_26, %c0_27, %c0_28] : memref<1x5x256xf32, #tpu.memory_space<vmem>>, vector<1x5x256xf32>
      %34 = vector.shape_cast %33 : vector<1x5x256xf32> to vector<5x256xf32>
      %35 = arith.truncf %34 : vector<5x256xf32> to vector<5x256xbf16>
      %c0_29 = arith.constant 0 : index
      %c0_30 = arith.constant 0 : index
      %36 = vector.load %arg9[%c0_29, %c0_30] : memref<5x256xbf16, #tpu.memory_space<vmem>>, vector<5x256xbf16>
      tpu.vector_store %arg9[%c0_29, %c0_30], %35 {strides = array<i32>} : memref<5x256xbf16, #tpu.memory_space<vmem>>, vector<5x256xbf16>,
    } else {
    }
    %c0 = arith.constant 0 : index
    %c0_1 = arith.constant 0 : index
    %c0_2 = arith.constant 0 : index
    %3 = vector.load %arg3[%c0, %c0_1, %c0_2] : memref<1x5x256xbf16, #tpu.memory_space<vmem>>, vector<1x5x256xbf16>
    %4 = vector.shape_cast %3 : vector<1x5x256xbf16> to vector<5x256xbf16>
    %c0_3 = arith.constant 0 : index
    %c0_4 = arith.constant 0 : index
    %c0_5 = arith.constant 0 : index
    %5 = vector.load %arg4[%c0_3, %c0_4, %c0_5] : memref<1x5x256xbf16, #tpu.memory_space<vmem>>, vector<1x5x256xbf16>
    %6 = vector.shape_cast %5 : vector<1x5x256xbf16> to vector<5x256xbf16>
    %c0_6 = arith.constant 0 : index
    %c0_7 = arith.constant 0 : index
    %7 = vector.load %arg9[%c0_6, %c0_7] : memref<5x256xbf16, #tpu.memory_space<vmem>>, vector<5x256xbf16>
    %cst = arith.constant dense<0.000000e+00> : vector<256x256xf32>
    %8 = tpu.matmul %4, %7, %cst {dimension_numbers = #tpu.dot_dimension_numbers<[0], [0], [1], [1], [0, 1, 1, 1], [], []>} : vector<5x256xbf16>, vector<5x256xbf16>, vector<256x256xf32> -> vector<256x256xf32>
    %c0_8 = arith.constant 0 : index
    %c0_9 = arith.constant 0 : index
    %9 = vector.load %arg7[%c0_8, %c0_9] : memref<1x256xf32, #tpu.memory_space<vmem>>, vector<1x256xf32>
    %cst_10 = arith.constant dense<0xFF800000> : vector<256xf32>
    %10 = vector.multi_reduction <maximumf>, %8, %cst_10 [0] : vector<256x256xf32> to vector<256xf32>
    %11 = vector.shape_cast %10 : vector<256xf32> to vector<1x256xf32>
    %12 = arith.maximumf %9, %11 : vector<1x256xf32>
    %13 = arith.subf %9, %12 : vector<1x256xf32>
    %14 = math.exp %13 : vector<1x256xf32>
    %15 = vector.broadcast %12 : vector<1x256xf32> to vector<256x256xf32>
    %16 = arith.subf %8, %15 : vector<256x256xf32>
    %17 = math.exp %16 : vector<256x256xf32>
    %18 = arith.truncf %17 : vector<256x256xf32> to vector<256x256xbf16>
    %cst_11 = arith.constant dense<0.000000e+00> : vector<5x256xf32>
    %19 = tpu.matmul %6, %18, %cst_11 {dimension_numbers = #tpu.dot_dimension_numbers<[1], [0], [0], [1], [0, 0, 1, 1], [], []>} : vector<5x256xbf16>, vector<256x256xbf16>, vector<5x256xf32> -> vector<5x256xf32>
    %c0_12 = arith.constant 0 : index
    %c0_13 = arith.constant 0 : index
    %20 = vector.load %arg8[%c0_12, %c0_13] : memref<5x256xf32, #tpu.memory_space<vmem>>, vector<5x256xf32>
    %21 = vector.broadcast %14 : vector<1x256xf32> to vector<5x256xf32>
    %22 = arith.mulf %21, %20 : vector<5x256xf32>
    %23 = arith.addf %22, %19 : vector<5x256xf32>
    %c0_14 = arith.constant 0 : index
    %c0_15 = arith.constant 0 : index
    %24 = vector.load %arg8[%c0_14, %c0_15] : memref<5x256xf32, #tpu.memory_space<vmem>>, vector<5x256xf32>
    tpu.vector_store %arg8[%c0_14, %c0_15], %23 {strides = array<i32>} : memref<5x256xf32, #tpu.memory_space<vmem>>, vector<5x256xf32>,
    %c0_16 = arith.constant 0 : index
    %c0_17 = arith.constant 0 : index
    %25 = vector.load %arg7[%c0_16, %c0_17] : memref<1x256xf32, #tpu.memory_space<vmem>>, vector<1x256xf32>
    tpu.vector_store %arg7[%c0_16, %c0_17], %12 {strides = array<i32>} : memref<1x256xf32, #tpu.memory_space<vmem>>, vector<1x256xf32>,
    %c0_i32_18 = arith.constant 0 : i32
    %26 = arith.cmpi eq, %arg2, %c0_i32_18 : i32
    %27 = arith.extui %26 : i1 to i32
    %c0_i32_19 = arith.constant 0 : i32
    %28 = arith.cmpi ne, %27, %c0_i32_19 : i32
    scf.if %28 {
      %c0_20 = arith.constant 0 : index
      %c0_21 = arith.constant 0 : index
      %29 = vector.load %arg8[%c0_20, %c0_21] : memref<5x256xf32, #tpu.memory_space<vmem>>, vector<5x256xf32>
      %30 = vector.extract_strided_slice %29 {offsets = [4, 0], sizes = [1, 256], strides = [1, 1]} : vector<5x256xf32> to vector<1x256xf32>
      %31 = tpu.reciprocal %30 {approx = true} : vector<1x256xf32> -> vector<1x256xf32>
      %c0_22 = arith.constant 0 : index
      %c0_23 = arith.constant 0 : index
      %c0_24 = arith.constant 0 : index
      %32 = vector.load %arg5[%c0_22, %c0_23, %c0_24] : memref<1x5x256xf32, #tpu.memory_space<vmem>>, vector<1x5x256xf32>
      %33 = vector.shape_cast %32 : vector<1x5x256xf32> to vector<5x256xf32>
      %34 = vector.extract_strided_slice %33 {offsets = [0, 0], sizes = [4, 256], strides = [1, 1]} : vector<5x256xf32> to vector<4x256xf32>
      %35 = vector.extract_strided_slice %29 {offsets = [0, 0], sizes = [4, 256], strides = [1, 1]} : vector<5x256xf32> to vector<4x256xf32>
      %36 = vector.broadcast %31 : vector<1x256xf32> to vector<4x256xf32>
      %37 = arith.mulf %35, %36 : vector<4x256xf32>
      %38 = arith.addf %34, %37 : vector<4x256xf32>
      %c0_25 = arith.constant 0 : index
      %c0_26 = arith.constant 0 : index
      %c0_27 = arith.constant 0 : index
      %39 = vector.load %arg6[%c0_25, %c0_26, %c0_27] : memref<1x4x256xf32, #tpu.memory_space<vmem>>, vector<1x4x256xf32>
      %40 = vector.shape_cast %39 : vector<1x4x256xf32> to vector<4x256xf32>
      %41 = vector.shape_cast %38 : vector<4x256xf32> to vector<1x4x256xf32>
      tpu.vector_store %arg6[%c0_25, %c0_26, %c0_27], %41 {strides = array<i32>} : memref<1x4x256xf32, #tpu.memory_space<vmem>>, vector<1x4x256xf32>,
    } else {
    }
    return
  }
  func.func @transform_0(%arg0: i32, %arg1: i32, %arg2: i32) -> (i32, i32, i32) {
    %c0_i32 = arith.constant 0 : i32
    %c0_i32_0 = arith.constant 0 : i32
    return %arg0, %c0_i32, %arg2 : i32, i32, i32
  }
  func.func @transform_1(%arg0: i32, %arg1: i32, %arg2: i32) -> (i32, i32, i32) {
    %c0_i32 = arith.constant 0 : i32
    %c0_i32_0 = arith.constant 0 : i32
    return %arg0, %c0_i32, %arg2 : i32, i32, i32
  }
  func.func @transform_2(%arg0: i32, %arg1: i32, %arg2: i32) -> (i32, i32, i32) {
    %c0_i32 = arith.constant 0 : i32
    %c0_i32_0 = arith.constant 0 : i32
    return %arg0, %c0_i32, %arg1 : i32, i32, i32
  }
  func.func @transform_3(%arg0: i32, %arg1: i32, %arg2: i32) -> (i32, i32, i32) {
    %c0_i32 = arith.constant 0 : i32
    %c0_i32_0 = arith.constant 0 : i32
    return %arg0, %c0_i32, %arg1 : i32, i32, i32
  }
}

</mosaic_0001>

<llo_original>
// kernel: msffm_attention.1
$region0: #{msffm_attention.1}
  #allocation0 [shape = 'u32[]', space=smem, size = 0x4, offset = 0x4, fixed_abs, tag = 'smem constant byte address 0x4 - core index']
  #allocation1 [shape = 'u32[72,128]{1,0:T(1,128)}', space=vmem, size = 0x9000, scoped, tag = 'internal scratch']
  #allocation2 [shape = 'f32[1,256]{1,0:T(1,128)}', space=vmem, size = 0x400, scoped, tag = 'scratch operand']
  #allocation3 [shape = 'f32[5,256]{1,0:T(8,128)}', space=vmem, size = 0x2000, scoped, tag = 'scratch operand']
  #allocation4 [shape = 'bf16[5,256]{1,0:T(8,128)(2,1)}', space=vmem, size = 0x1000, scoped, tag = 'scratch operand']
  %s0 = inlined_call_operand.vmem [shape: bf16[2,5,256], index: 0, kind: input, shape index: {}]
  %s1 = inlined_call_operand.vmem [shape: bf16[2,5,256], index: 1, kind: input, shape index: {}]
  %s2 = inlined_call_operand.vmem [shape: f32[2,5,256], index: 2, kind: input, shape index: {}]
  %s3 = inlined_call_operand.vmem [shape: f32[2,4,256], index: 3, kind: output, shape index: {}]
  %s4 = sld [smem:[#allocation0]]
  $region53: #{msffm_attention.1} parent=0
    _
  %s6 = ssub.s32 1, %s4
  %s7 = scalar_select 0, %s6, %s4
  loop: start=0, step=1, limit=4
  $region2: #{msffm_attention.1} parent=0 // loop_pre_header
    _
  $region3: #{msffm_attention.1} parent=0 // loop_header
    %s9 = sphi 0, %s13
    %p10 = scmp.ge.s32.totalorder %s9, 4
    %s16 = sphi 0, %s35
    %s17 = sphi 0, %s31
    %s18 = sphi 0, %s27
    %s19 = sphi 0, %s16
    %s20 = sphi 0, %s17
    %s21 = sphi 0, %s18
    %s22 = sphi 0, %s19
    %s23 = sphi 0, %s20
    %s24 = sphi 0, %s21
    %s40 = sphi 0, %s42
    %s43 = sphi 0, %s40
    %s44 = sphi 0, %s43
    %s60 = sphi 0, %s44
    %s68 = sphi 0, %s70
    %s71 = sphi 0, %s68
    %s72 = sphi 0, %s71
    %s88 = sphi 0, %s72
    %s96 = sphi 0, %s98
    %s99 = sphi 0, %s96
    %s100 = sphi 0, %s99
    %s116 = sphi 0, %s100
    %s124 = sphi 0, %s126
    %s127 = sphi 0, %s124
    %s128 = sphi 0, %s127
    %s144 = sphi 0, %s128
  $region4: #{msffm_attention.1} parent=0 // loop_header_branch
    %12 = sbr.rel (%p10) target = $region8
  $region5: #{msffm_attention.1} parent=0 // loop_body
    %s14 = ssub.s32 %s9, 1
    %s15 = ssub.s32 %s9, 2
    %s25 = sadd.s32 1, %s18
    %p26 = scmp.ge.s32.totalorder %s25, 1
    %s27 = scalar_select %p26, 0, %s25
    %s28 = sadd.s32 1, %s17
    %s29 = scalar_select %p26, %s28, %s17
    %p30 = scmp.ge.s32.totalorder %s29, 1
    %s31 = scalar_select %p30, 0, %s29
    %s32 = sadd.s32 1, %s16
    %s33 = scalar_select %p30, %s32, %s16
    %p34 = scmp.ge.s32.totalorder %s33, 2
    %s35 = scalar_select %p34, 0, %s33
    %s36 = ssub.s32 %s16, %s35
    %s37 = ssub.s32 %s18, %s27
    %s38 = sor.u32 %s36, %s37
    %p39 = scmp.eq.s32.totalorder %s38, 0
    %s41 = sadd.s32 %s40, 1
    %s42 = scalar_select %p39, %s40, %s41
    %p45 = pneg %p39
    %p46 = scmp.eq.s32.totalorder %s9, 1
    %p47 = por %p45, %p46
    %p48 = scmp.ne.s32.totalorder %s40, %s43
    %p49 = scmp.eq.s32.totalorder %s9, 0
    %p50 = por %p48, %p49
    %p51 = scmp.ne.s32.totalorder %s40, %s43
    %p52 = scmp.eq.s32.totalorder %s14, 1
    %p53 = por %p51, %p52
    %p54 = scmp.ne.s32.totalorder %s43, %s44
    %p55 = scmp.eq.s32.totalorder %s14, 0
    %p56 = por %p54, %p55
    %p57 = scmp.ne.s32.totalorder %s43, %s44
    %p58 = scmp.eq.s32.totalorder %s15, 1
    %p59 = por %p57, %p58
    %p61 = scmp.ne.s32.totalorder %s44, %s60
    %p62 = scmp.eq.s32.totalorder %s15, 0
    %p63 = por %p61, %p62
    %s64 = ssub.s32 %s16, %s35
    %s65 = ssub.s32 %s18, %s27
    %s66 = sor.u32 %s64, %s65
    %p67 = scmp.eq.s32.totalorder %s66, 0
    %s69 = sadd.s32 %s68, 1
    %s70 = scalar_select %p67, %s68, %s69
    %p73 = pneg %p67
    %p74 = scmp.eq.s32.totalorder %s9, 1
    %p75 = por %p73, %p74
    %p76 = scmp.ne.s32.totalorder %s68, %s71
    %p77 = scmp.eq.s32.totalorder %s9, 0
    %p78 = por %p76, %p77
    %p79 = scmp.ne.s32.totalorder %s68, %s71
    %p80 = scmp.eq.s32.totalorder %s14, 1
    %p81 = por %p79, %p80
    %p82 = scmp.ne.s32.totalorder %s71, %s72
    %p83 = scmp.eq.s32.totalorder %s14, 0
    %p84 = por %p82, %p83
    %p85 = scmp.ne.s32.totalorder %s71, %s72
    %p86 = scmp.eq.s32.totalorder %s15, 1
    %p87 = por %p85, %p86
    %p89 = scmp.ne.s32.totalorder %s72, %s88
    %p90 = scmp.eq.s32.totalorder %s15, 0
    %p91 = por %p89, %p90
    %s92 = ssub.s32 %s16, %s35
    %s93 = ssub.s32 %s17, %s31
    %s94 = sor.u32 %s92, %s93
    %p95 = scmp.eq.s32.totalorder %s94, 0
    %s97 = sadd.s32 %s96, 1
    %s98 = scalar_select %p95, %s96, %s97
    %p101 = pneg %p95
    %p102 = scmp.eq.s32.totalorder %s9, 1
    %p103 = por %p101, %p102
    %p104 = scmp.ne.s32.totalorder %s96, %s99
    %p105 = scmp.eq.s32.totalorder %s9, 0
    %p106 = por %p104, %p105
    %p107 = scmp.ne.s32.totalorder %s96, %s99
    %p108 = scmp.eq.s32.totalorder %s14, 1
    %p109 = por %p107, %p108
    %p110 = scmp.ne.s32.totalorder %s99, %s100
    %p111 = scmp.eq.s32.totalorder %s14, 0
    %p112 = por %p110, %p111
    %p113 = scmp.ne.s32.totalorder %s99, %s100
    %p114 = scmp.eq.s32.totalorder %s15, 1
    %p115 = por %p113, %p114
    %p117 = scmp.ne.s32.totalorder %s100, %s116
    %p118 = scmp.eq.s32.totalorder %s15, 0
    %p119 = por %p117, %p118
    %s120 = ssub.s32 %s16, %s35
    %s121 = ssub.s32 %s17, %s31
    %s122 = sor.u32 %s120, %s121
    %p123 = scmp.eq.s32.totalorder %s122, 0
    %s125 = sadd.s32 %s124, 1
    %s126 = scalar_select %p123, %s124, %s125
    %p129 = pneg %p123
    %p130 = scmp.eq.s32.totalorder %s9, 1
    %p131 = por %p129, %p130
    %p132 = scmp.ne.s32.totalorder %s124, %s127
    %p133 = scmp.eq.s32.totalorder %s9, 0
    %p134 = por %p132, %p133
    %p135 = scmp.ne.s32.totalorder %s124, %s127
    %p136 = scmp.eq.s32.totalorder %s14, 1
    %p137 = por %p135, %p136
    %p138 = scmp.ne.s32.totalorder %s127, %s128
    %p139 = scmp.eq.s32.totalorder %s14, 0
    %p140 = por %p138, %p139
    %p141 = scmp.ne.s32.totalorder %s127, %s128
    %p142 = scmp.eq.s32.totalorder %s15, 1
    %p143 = por %p141, %p142
    %p145 = scmp.ne.s32.totalorder %s128, %s144
    %p146 = scmp.eq.s32.totalorder %s15, 0
    %p147 = por %p145, %p146
    %p148 = scmp.le.s32.totalorder 1, %s9
    %p149 = scmp.lt.s32.totalorder %s9, 3
    %p150 = pnand %p148, %p149
    %p151 = pneg %p150
    // Predicated region
    $region9: #{msffm_attention.1} parent=5 // pred_check
      _
    $region10: #{msffm_attention.1} parent=5 // pred_check_branch
      %153 = sbr.rel (%p150) target = $region12
    $region11: #{msffm_attention.1} parent=5 // pred_region
      %s154 = ssub.s32 %s9, 1
    $region12: #{msffm_attention.1} parent=5 // pred_fallthru
      _
    %p155 = scmp.lt.s32.totalorder %s9, 2
    // Predicated region
    $region13: #{msffm_attention.1} parent=5 // pred_check
      %p156 = pneg %p155
    $region14: #{msffm_attention.1} parent=5 // pred_check_branch
      %158 = sbr.rel (%p156) target = $region16
    $region15: #{msffm_attention.1} parent=5 // pred_region
      // Predicated region
      $region17: #{msffm_attention.1} parent=15 // pred_check
        %p159 = pneg %p50
      $region18: #{msffm_attention.1} parent=15 // pred_check_branch
        %161 = sbr.rel (%p159) target = $region20
      $region19: #{msffm_attention.1} parent=15 // pred_region
        %s162 = smul.u32 2, %s18
        %p163 = scmp.lt.s32.totalorder %s16, 1
        %s164 = scalar_select %p163, %s16, 1
        %p165 = scmp.lt.s32.totalorder %s162, 1
        %s166 = scalar_select %p165, %s162, 1
        %s167 = smul.addr %s164, 2
        %s168 = sadd.s32 %s166, %s167
        %s169 = smul.addr %s168, 4
        %s170 = scalar_lea.vmem %s0, %s169
        %s171 = smul.u32 2, %s18
      $region20: #{msffm_attention.1} parent=15 // pred_fallthru
        _
      // Predicated region
      $region21: #{msffm_attention.1} parent=15 // pred_check
        %p172 = pneg %p78
      $region22: #{msffm_attention.1} parent=15 // pred_check_branch
        %174 = sbr.rel (%p172) target = $region24
      $region23: #{msffm_attention.1} parent=15 // pred_region
        %s175 = smul.u32 2, %s18
        %p176 = scmp.lt.s32.totalorder %s16, 1
        %s177 = scalar_select %p176, %s16, 1
        %p178 = scmp.lt.s32.totalorder %s175, 1
        %s179 = scalar_select %p178, %s175, 1
        %s180 = smul.addr %s177, 2
        %s181 = sadd.s32 %s179, %s180
        %s182 = smul.addr %s181, 4
        %s183 = scalar_lea.vmem %s1, %s182
        %s184 = smul.u32 2, %s18
      $region24: #{msffm_attention.1} parent=15 // pred_fallthru
        _
      // Predicated region
      $region25: #{msffm_attention.1} parent=15 // pred_check
        %p185 = pneg %p106
      $region26: #{msffm_attention.1} parent=15 // pred_check_branch
        %187 = sbr.rel (%p185) target = $region28
      $region27: #{msffm_attention.1} parent=15 // pred_region
        %s188 = smul.u32 2, %s17
        %p189 = scmp.lt.s32.totalorder %s16, 1
        %s190 = scalar_select %p189, %s16, 1
        %p191 = scmp.lt.s32.totalorder %s188, 1
        %s192 = scalar_select %p191, %s188, 1
        %s193 = smul.addr %s190, 2
        %s194 = sadd.s32 %s192, %s193
        %s195 = smul.addr %s194, 8
        %s196 = scalar_lea.vmem %s2, %s195
        %s197 = smul.u32 2, %s17
      $region28: #{msffm_attention.1} parent=15 // pred_fallthru
        _
    $region16: #{msffm_attention.1} parent=5 // pred_fallthru
      _
    %p198 = scmp.le.s32.totalorder 1, %s9
    %p199 = scmp.lt.s32.totalorder %s9, 3
    %p200 = pnand %p198, %p199
    %p201 = pneg %p200
    // Predicated region
    $region29: #{msffm_attention.1} parent=5 // pred_check
      _
    $region30: #{msffm_attention.1} parent=5 // pred_check_branch
      %203 = sbr.rel (%p200) target = $region32
    $region31: #{msffm_attention.1} parent=5 // pred_region
      %s204 = ssub.s32 %s9, 1
      %s205 = smul.u32 2, %s21
      %p206 = scmp.lt.s32.totalorder %s19, 1
      %s207 = scalar_select %p206, %s19, 1
      %p208 = scmp.lt.s32.totalorder %s205, 1
      %s209 = scalar_select %p208, %s205, 1
      %s210 = smul.addr %s207, 2
      %s211 = sadd.s32 %s209, %s210
      %s212 = smul.addr %s211, 4
      %s213 = scalar_lea.vmem %s0, %s212
      %p214 = pneg %p56
      %p215 = pneg %p53
      %s216 = smul.u32 2, %s21
      %p217 = scmp.lt.s32.totalorder %s19, 1
      %s218 = scalar_select %p217, %s19, 1
      %p219 = scmp.lt.s32.totalorder %s216, 1
      %s220 = scalar_select %p219, %s216, 1
      %s221 = smul.addr %s218, 2
      %s222 = sadd.s32 %s220, %s221
      %s223 = smul.addr %s222, 4
      %s224 = scalar_lea.vmem %s1, %s223
      %p225 = pneg %p84
      %p226 = pneg %p81
      %s227 = smul.u32 2, %s20
      %p228 = scmp.lt.s32.totalorder %s19, 1
      %s229 = scalar_select %p228, %s19, 1
      %p230 = scmp.lt.s32.totalorder %s227, 1
      %s231 = scalar_select %p230, %s227, 1
      %s232 = smul.addr %s229, 2
      %s233 = sadd.s32 %s231, %s232
      %s234 = smul.addr %s233, 8
      %s235 = scalar_lea.vmem %s2, %s234
      %p236 = pneg %p112
      %p237 = pneg %p109
      %p238 = pneg %p140
      %p239 = pneg %p137
      %s240 = smul.u32 2, %s20
      %p241 = scmp.lt.s32.totalorder %s19, 1
      %s242 = scalar_select %p241, %s19, 1
      %p243 = scmp.lt.s32.totalorder %s240, 1
      %s244 = scalar_select %p243, %s240, 1
      %s245 = smul.addr %s242, 2
      %s246 = sadd.s32 %s244, %s245
      %s247 = smul.addr %s246, 4
      %s248 = scalar_lea.vmem %s3, %s247
      %s249 = smul.u32 2, %s21
      %p250 = scmp.lt.s32.totalorder %s19, 1
      %s251 = scalar_select %p250, %s19, 1
      %p252 = scmp.lt.s32.totalorder %s249, 1
      %s253 = scalar_select %p252, %s249, 1
      %s254 = smul.addr %s251, 2
      %s255 = sadd.s32 %s253, %s254
      %s256 = smul.addr %s255, 4
      %s257 = scalar_lea.vmem %s0, %s256
      %s258 = smul.u32 2, %s21
      %s259 = smul.u32 2, %s21
      %p260 = scmp.lt.s32.totalorder %s19, 1
      %s261 = scalar_select %p260, %s19, 1
      %p262 = scmp.lt.s32.totalorder %s259, 1
      %s263 = scalar_select %p262, %s259, 1
      %s264 = smul.addr %s261, 2
      %s265 = sadd.s32 %s263, %s264
      %s266 = smul.addr %s265, 4
      %s267 = scalar_lea.vmem %s1, %s266
      %s268 = smul.u32 2, %s21
      %s269 = smul.u32 2, %s20
      %p270 = scmp.lt.s32.totalorder %s19, 1
      %s271 = scalar_select %p270, %s19, 1
      %p272 = scmp.lt.s32.totalorder %s269, 1
      %s273 = scalar_select %p272, %s269, 1
      %s274 = smul.addr %s271, 2
      %s275 = sadd.s32 %s273, %s274
      %s276 = smul.addr %s275, 8
      %s277 = scalar_lea.vmem %s2, %s276
      %s278 = smul.u32 2, %s20
      %s279 = smul.u32 2, %s20
      %p280 = scmp.lt.s32.totalorder %s19, 1
      %s281 = scalar_select %p280, %s19, 1
      %p282 = scmp.lt.s32.totalorder %s279, 1
      %s283 = scalar_select %p282, %s279, 1
      %s284 = smul.addr %s281, 2
      %s285 = sadd.s32 %s283, %s284
      %s286 = smul.addr %s285, 4
      %s287 = scalar_lea.vmem %s3, %s286
      %s288 = smul.u32 2, %s20
      %p290 = scmp.eq.s32.totalorder %s21, 0
      // Predicated region
      $region33: #{msffm_attention.1} parent=31 // pred_check
        %p291 = pneg %p290
      $region34: #{msffm_attention.1} parent=31 // pred_check_branch
        %293 = sbr.rel (%p291) target = $region36
      $region35: #{msffm_attention.1} parent=31 // pred_region
        %v294 = vlaneseq
        %vm295 = vcmp.ge.s32.totalorder %v294, 0
        %vm296 = vcmp.lt.s32.totalorder %v294, 256
        %vm297 = vmand %vm295, %vm296
        %298 = vst.msk [vmem:[#allocation2] sm:$0x3] %vm297, -inf
        %299 = vst [vmem:[#allocation3] sm:$0x1f] 0.0
        %300 = vst [vmem:[#allocation3 + $0x8] sm:$0x1f] 0.0
        %v301 = vld [vmem:[%s277] sm:$0x1f]
        %v302 = vld [vmem:[%s277 + $0x8] sm:$0x1f]
        %v303 = vpack.c.bf16 %v302, %v301
        %vm304 = vcmask 1042432
        %vm305 = vsmask.f32 2304
        %vm306 = vmand %vm304, %vm305
        %vm307 = vcmask 1046532
        %vm308 = vsmask.f32 6400
        %vm309 = vmand %vm307, %vm308
        %vm310 = vmor %vm309, %vm306
        %v311 = vld [vmem:[#allocation4] sm:$0x77]
        %v312 = vsel %vm310, %v303, %v311
        %313 = vst [vmem:[#allocation4] sm:$0x77] %v312
      $region36: #{msffm_attention.1} parent=31 // pred_fallthru
        _
      %v314 = vld [vmem:[%s257] sm:$0x77]
      %v315 = vld [vmem:[%s267] sm:$0x77]
      %v316 = vld [vmem:[#allocation4] sm:$0x77]
      %v318 = vunpack.c.l.b16 %v314
      %v319 = vunpack.c.h.b16 %v314
      %v320 = vpack.c.b16 %v318, %v318
      %v321 = vpack.c.b16 %v319, %v319
      %324 = vxpose.binary.xlu0.c.b16.start [1/16] %v321, %v320, 128
      %325 = vxpose.binary.xlu0.c.b16.cont [2/16] 0, 0, 128
      %326 = vxpose.binary.xlu0.c.b16.cont [3/16] 0, 0, 128
      %327 = vxpose.binary.xlu0.c.b16.cont [4/16] 0, 0, 128
      %328 = vxpose.binary.xlu0.c.b16.cont [5/16] 0, 0, 128
      %329 = vxpose.binary.xlu0.c.b16.cont [6/16] 0, 0, 128
      %330 = vxpose.binary.xlu0.c.b16.cont [7/16] 0, 0, 128
      %331 = vxpose.binary.xlu0.c.b16.end [8/16] 0, 0, 128
      %v332 = vpop.trf.xlu0
      %v333 = vpop.trf.xlu0
      %v334 = vpop.trf.xlu0
      %v335 = vpop.trf.xlu0
      %v336 = vpop.trf.xlu0
      %v337 = vpop.trf.xlu0
      %v338 = vpop.trf.xlu0
      %v339 = vpop.trf.xlu0
      %v340 = vpop.trf.xlu0
      %v341 = vpop.trf.xlu0
      %v342 = vpop.trf.xlu0
      %v343 = vpop.trf.xlu0
      %v344 = vpop.trf.xlu0
      %v345 = vpop.trf.xlu0
      %v346 = vpop.trf.xlu0
      %v347 = vpop.trf.xlu0
      %v349 = vunpack.c.l.b16 %v316
      %v350 = vunpack.c.h.b16 %v316
      %v351 = vpack.c.b16 %v349, %v349
      %v352 = vpack.c.b16 %v350, %v350
      %vm353 = vcmask 39936
      %v355 = vsel %vm353, %v332, 0
      %v358 = vsel %vm353, %v334, 0
      %v361 = vsel %vm353, %v336, 0
      %v364 = vsel %vm353, %v338, 0
      %v367 = vsel %vm353, %v340, 0
      %v370 = vsel %vm353, %v342, 0
      %v373 = vsel %vm353, %v344, 0
      %v376 = vsel %vm353, %v346, 0
      %v379 = vsel %vm353, %v333, 0
      %v382 = vsel %vm353, %v335, 0
      %v385 = vsel %vm353, %v337, 0
      %v388 = vsel %vm353, %v339, 0
      %v391 = vsel %vm353, %v341, 0
      %v394 = vsel %vm353, %v343, 0
      %v397 = vsel %vm353, %v345, 0
      %v400 = vsel %vm353, %v347, 0
      %vm402 = vcmask 1041408
      %vm403 = vcmask 1042432
      %v404 = vsel %vm402, 4294967295, 65535
      %v405 = vsel %vm403, %v404, 0
      %v407 = vand.u32 %v351, %v405
      %v410 = vand.u32 %v352, %v405
      %412 = vmatpush.bf16.msra.mxu0 0
      %413 = vmatpush.bf16.msra.mxu0 0
      %414 = vmatpush.bf16.msra.mxu0 0
      %415 = vmatpush.bf16.msra.mxu0 0
      %416 = vmatpush.bf16.msra.mxu0 0
      %417 = vmatpush.bf16.msra.mxu0 0
      %418 = vmatpush.bf16.msra.mxu0 0
      %419 = vmatpush.bf16.msra.mxu0 %v407
      %420 = vmatmul.bf16.gmra.mxu0 %v355
      %v421 = vpop.f32.mrf.mxu0
      %v422 = vadd.f32 0.0, %v421
      %v423 = vpop.f32.mrf.mxu0
      %v424 = vadd.f32 0.0, %v423
      %425 = vmatmul.bf16.gmra.mxu0 %v358
      %v426 = vpop.f32.mrf.mxu0
      %v427 = vadd.f32 0.0, %v426
      %v428 = vpop.f32.mrf.mxu0
      %v429 = vadd.f32 0.0, %v428
      %430 = vmatmul.bf16.gmra.mxu0 %v361
      %v431 = vpop.f32.mrf.mxu0
      %v432 = vadd.f32 0.0, %v431
      %v433 = vpop.f32.mrf.mxu0
      %v434 = vadd.f32 0.0, %v433
      %435 = vmatmul.bf16.gmra.mxu0 %v364
      %v436 = vpop.f32.mrf.mxu0
      %v437 = vadd.f32 0.0, %v436
      %v438 = vpop.f32.mrf.mxu0
      %v439 = vadd.f32 0.0, %v438
      %440 = vmatmul.bf16.gmra.mxu0 %v367
      %v441 = vpop.f32.mrf.mxu0
      %v442 = vadd.f32 0.0, %v441
      %v443 = vpop.f32.mrf.mxu0
      %v444 = vadd.f32 0.0, %v443
      %445 = vmatmul.bf16.gmra.mxu0 %v370
      %v446 = vpop.f32.mrf.mxu0
      %v447 = vadd.f32 0.0, %v446
      %v448 = vpop.f32.mrf.mxu0
      %v449 = vadd.f32 0.0, %v448
      %450 = vmatmul.bf16.gmra.mxu0 %v373
      %v451 = vpop.f32.mrf.mxu0
      %v452 = vadd.f32 0.0, %v451
      %v453 = vpop.f32.mrf.mxu0
      %v454 = vadd.f32 0.0, %v453
      %455 = vmatmul.bf16.gmra.mxu0 %v376
      %v456 = vpop.f32.mrf.mxu0
      %v457 = vadd.f32 0.0, %v456
      %v458 = vpop.f32.mrf.mxu0
      %v459 = vadd.f32 0.0, %v458
      %460 = vmatmul.bf16.gmra.mxu0 %v379
      %v461 = vpop.f32.mrf.mxu0
      %v462 = vadd.f32 0.0, %v461
      %v463 = vpop.f32.mrf.mxu0
      %v464 = vadd.f32 0.0, %v463
      %465 = vmatmul.bf16.gmra.mxu0 %v382
      %v466 = vpop.f32.mrf.mxu0
      %v467 = vadd.f32 0.0, %v466
      %v468 = vpop.f32.mrf.mxu0
      %v469 = vadd.f32 0.0, %v468
      %470 = vmatmul.bf16.gmra.mxu0 %v385
      %v471 = vpop.f32.mrf.mxu0
      %v472 = vadd.f32 0.0, %v471
      %v473 = vpop.f32.mrf.mxu0
      %v474 = vadd.f32 0.0, %v473
      %475 = vmatmul.bf16.gmra.mxu0 %v388
      %v476 = vpop.f32.mrf.mxu0
      %v477 = vadd.f32 0.0, %v476
      %v478 = vpop.f32.mrf.mxu0
      %v479 = vadd.f32 0.0, %v478
      %480 = vmatmul.bf16.gmra.mxu0 %v391
      %v481 = vpop.f32.mrf.mxu0
      %v482 = vadd.f32 0.0, %v481
      %v483 = vpop.f32.mrf.mxu0
      %v484 = vadd.f32 0.0, %v483
      %485 = vmatmul.bf16.gmra.mxu0 %v394
      %v486 = vpop.f32.mrf.mxu0
      %v487 = vadd.f32 0.0, %v486
      %v488 = vpop.f32.mrf.mxu0
      %v489 = vadd.f32 0.0, %v488
      %490 = vmatmul.bf16.gmra.mxu0 %v397
      %v491 = vpop.f32.mrf.mxu0
      %v492 = vadd.f32 0.0, %v491
      %v493 = vpop.f32.mrf.mxu0
      %v494 = vadd.f32 0.0, %v493
      %495 = vmatmul.bf16.gmra.mxu0 %v400
      %v496 = vpop.f32.mrf.mxu0
      %v497 = vadd.f32 0.0, %v496
      %v498 = vpop.f32.mrf.mxu0
      %v499 = vadd.f32 0.0, %v498
      %500 = vdwg.mxu0
      %501 = vmatpush.bf16.msra.mxu0 0
      %502 = vmatpush.bf16.msra.mxu0 0
      %503 = vmatpush.bf16.msra.mxu0 0
      %504 = vmatpush.bf16.msra.mxu0 0
      %505 = vmatpush.bf16.msra.mxu0 0
      %506 = vmatpush.bf16.msra.mxu0 0
      %507 = vmatpush.bf16.msra.mxu0 0
      %508 = vmatpush.bf16.msra.mxu0 %v410
      %509 = vmatmul.bf16.gmra.mxu0 %v355
      %v510 = vpop.f32.mrf.mxu0
      %v511 = vadd.f32 0.0, %v510
      %v512 = vpop.f32.mrf.mxu0
      %v513 = vadd.f32 0.0, %v512
      %514 = vmatmul.bf16.gmra.mxu0 %v358
      %v515 = vpop.f32.mrf.mxu0
      %v516 = vadd.f32 0.0, %v515
      %v517 = vpop.f32.mrf.mxu0
      %v518 = vadd.f32 0.0, %v517
      %519 = vmatmul.bf16.gmra.mxu0 %v361
      %v520 = vpop.f32.mrf.mxu0
      %v521 = vadd.f32 0.0, %v520
      %v522 = vpop.f32.mrf.mxu0
      %v523 = vadd.f32 0.0, %v522
      %524 = vmatmul.bf16.gmra.mxu0 %v364
      %v525 = vpop.f32.mrf.mxu0
      %v526 = vadd.f32 0.0, %v525
      %v527 = vpop.f32.mrf.mxu0
      %v528 = vadd.f32 0.0, %v527
      %529 = vmatmul.bf16.gmra.mxu0 %v367
      %v530 = vpop.f32.mrf.mxu0
      %v531 = vadd.f32 0.0, %v530
      %v532 = vpop.f32.mrf.mxu0
      %v533 = vadd.f32 0.0, %v532
      %534 = vmatmul.bf16.gmra.mxu0 %v370
      %v535 = vpop.f32.mrf.mxu0
      %v536 = vadd.f32 0.0, %v535
      %v537 = vpop.f32.mrf.mxu0
      %v538 = vadd.f32 0.0, %v537
      %539 = vmatmul.bf16.gmra.mxu0 %v373
      %v540 = vpop.f32.mrf.mxu0
      %v541 = vadd.f32 0.0, %v540
      %v542 = vpop.f32.mrf.mxu0
      %v543 = vadd.f32 0.0, %v542
      %544 = vmatmul.bf16.gmra.mxu0 %v376
      %v545 = vpop.f32.mrf.mxu0
      %v546 = vadd.f32 0.0, %v545
      %v547 = vpop.f32.mrf.mxu0
      %v548 = vadd.f32 0.0, %v547
      %549 = vmatmul.bf16.gmra.mxu0 %v379
      %v550 = vpop.f32.mrf.mxu0
      %v551 = vadd.f32 0.0, %v550
      %v552 = vpop.f32.mrf.mxu0
      %v553 = vadd.f32 0.0, %v552
      %554 = vmatmul.bf16.gmra.mxu0 %v382
      %v555 = vpop.f32.mrf.mxu0
      %v556 = vadd.f32 0.0, %v555
      %v557 = vpop.f32.mrf.mxu0
      %v558 = vadd.f32 0.0, %v557
      %559 = vmatmul.bf16.gmra.mxu0 %v385
      %v560 = vpop.f32.mrf.mxu0
      %v561 = vadd.f32 0.0, %v560
      %v562 = vpop.f32.mrf.mxu0
      %v563 = vadd.f32 0.0, %v562
      %564 = vmatmul.bf16.gmra.mxu0 %v388
      %v565 = vpop.f32.mrf.mxu0
      %v566 = vadd.f32 0.0, %v565
      %v567 = vpop.f32.mrf.mxu0
      %v568 = vadd.f32 0.0, %v567
      %569 = vmatmul.bf16.gmra.mxu0 %v391
      %v570 = vpop.f32.mrf.mxu0
      %v571 = vadd.f32 0.0, %v570
      %v572 = vpop.f32.mrf.mxu0
      %v573 = vadd.f32 0.0, %v572
      %574 = vmatmul.bf16.gmra.mxu0 %v394
      %v575 = vpop.f32.mrf.mxu0
      %v576 = vadd.f32 0.0, %v575
      %v577 = vpop.f32.mrf.mxu0
      %v578 = vadd.f32 0.0, %v577
      %579 = vmatmul.bf16.gmra.mxu0 %v397
      %v580 = vpop.f32.mrf.mxu0
      %v581 = vadd.f32 0.0, %v580
      %v582 = vpop.f32.mrf.mxu0
      %v583 = vadd.f32 0.0, %v582
      %584 = vmatmul.bf16.gmra.mxu0 %v400
      %v585 = vpop.f32.mrf.mxu0
      %v586 = vadd.f32 0.0, %v585
      %v587 = vpop.f32.mrf.mxu0
      %v588 = vadd.f32 0.0, %v587
      %589 = vdwg.mxu0
      %v590 = vld [vmem:[#allocation2] sm:$0x3]
      %v591 = vmax.f32 %v422, %v427
      %v592 = vmax.f32 %v424, %v429
      %v593 = vmax.f32 %v591, %v432
      %v594 = vmax.f32 %v592, %v434
      %v595 = vmax.f32 %v593, %v437
      %v596 = vmax.f32 %v594, %v439
      %v597 = vmax.f32 %v595, %v442
      %v598 = vmax.f32 %v596, %v444
      %v599 = vmax.f32 %v597, %v447
      %v600 = vmax.f32 %v598, %v449
      %v601 = vmax.f32 %v599, %v452
      %v602 = vmax.f32 %v600, %v454
      %v603 = vmax.f32 %v601, %v457
      %v604 = vmax.f32 %v602, %v459
      %v605 = vmax.f32 %v603, %v462
      %v606 = vmax.f32 %v604, %v464
      %v607 = vmax.f32 %v605, %v467
      %v608 = vmax.f32 %v606, %v469
      %v609 = vmax.f32 %v607, %v472
      %v610 = vmax.f32 %v608, %v474
      %v611 = vmax.f32 %v609, %v477
      %v612 = vmax.f32 %v610, %v479
      %v613 = vmax.f32 %v611, %v482
      %v614 = vmax.f32 %v612, %v484
      %v615 = vmax.f32 %v613, %v487
      %v616 = vmax.f32 %v614, %v489
      %v617 = vmax.f32 %v615, %v492
      %v618 = vmax.f32 %v616, %v494
      %v619 = vmax.f32 %v617, %v497
      %v620 = vmax.f32 %v618, %v499
      %v621 = vmax.f32 %v619, %v620
      %v622 = vrot.slane %v621, 4
      %v623 = vmax.f32 %v621, %v622
      %v624 = vrot.slane %v623, 2
      %v625 = vmax.f32 %v623, %v624
      %v626 = vrot.slane %v625, 1
      %v627 = vmax.f32 %v625, %v626
      %v628 = vmax.f32 %v511, %v516
      %v629 = vmax.f32 %v513, %v518
      %v630 = vmax.f32 %v628, %v521
      %v631 = vmax.f32 %v629, %v523
      %v632 = vmax.f32 %v630, %v526
      %v633 = vmax.f32 %v631, %v528
      %v634 = vmax.f32 %v632, %v531
      %v635 = vmax.f32 %v633, %v533
      %v636 = vmax.f32 %v634, %v536
      %v637 = vmax.f32 %v635, %v538
      %v638 = vmax.f32 %v636, %v541
      %v639 = vmax.f32 %v637, %v543
      %v640 = vmax.f32 %v638, %v546
      %v641 = vmax.f32 %v639, %v548
      %v642 = vmax.f32 %v640, %v551
      %v643 = vmax.f32 %v641, %v553
      %v644 = vmax.f32 %v642, %v556
      %v645 = vmax.f32 %v643, %v558
      %v646 = vmax.f32 %v644, %v561
      %v647 = vmax.f32 %v645, %v563
      %v648 = vmax.f32 %v646, %v566
      %v649 = vmax.f32 %v647, %v568
      %v650 = vmax.f32 %v648, %v571
      %v651 = vmax.f32 %v649, %v573
      %v652 = vmax.f32 %v650, %v576
      %v653 = vmax.f32 %v651, %v578
      %v654 = vmax.f32 %v652, %v581
      %v655 = vmax.f32 %v653, %v583
      %v656 = vmax.f32 %v654, %v586
      %v657 = vmax.f32 %v655, %v588
      %v658 = vmax.f32 %v656, %v657
      %v659 = vrot.slane %v658, 4
      %v660 = vmax.f32 %v658, %v659
      %v661 = vrot.slane %v660, 2
      %v662 = vmax.f32 %v660, %v661
      %v663 = vrot.slane %v662, 1
      %v664 = vmax.f32 %v662, %v663
      %v667 = vrot.slane %v664, 7
      %vm668 = vcmask 1040384
      %v669 = vsel %vm668, %v627, %v667
      %v671 = vmax.f32 %v590, %v669
      %v672 = vsub.f32 %v590, %v671
      %v673 = vmul.f32 %v672, 1.442695
      %v674 = vpow.pop %v673
      %v676 = vperm.slane %v671, 0
      %v677 = vperm.slane %v671, 1
      %v680 = vsub.f32 %v422, %v676
      %v681 = vsub.f32 %v511, %v677
      %v682 = vsub.f32 %v424, %v676
      %v683 = vsub.f32 %v513, %v677
      %v684 = vsub.f32 %v427, %v676
      %v685 = vsub.f32 %v516, %v677
      %v686 = vsub.f32 %v429, %v676
      %v687 = vsub.f32 %v518, %v677
      %v688 = vsub.f32 %v432, %v676
      %v689 = vsub.f32 %v521, %v677
      %v690 = vsub.f32 %v434, %v676
      %v691 = vsub.f32 %v523, %v677
      %v692 = vsub.f32 %v437, %v676
      %v693 = vsub.f32 %v526, %v677
      %v694 = vsub.f32 %v439, %v676
      %v695 = vsub.f32 %v528, %v677
      %v696 = vsub.f32 %v442, %v676
      %v697 = vsub.f32 %v531, %v677
      %v698 = vsub.f32 %v444, %v676
      %v699 = vsub.f32 %v533, %v677
      %v700 = vsub.f32 %v447, %v676
      %v701 = vsub.f32 %v536, %v677
      %v702 = vsub.f32 %v449, %v676
      %v703 = vsub.f32 %v538, %v677
      %v704 = vsub.f32 %v452, %v676
      %v705 = vsub.f32 %v541, %v677
      %v706 = vsub.f32 %v454, %v676
      %v707 = vsub.f32 %v543, %v677
      %v708 = vsub.f32 %v457, %v676
      %v709 = vsub.f32 %v546, %v677
      %v710 = vsub.f32 %v459, %v676
      %v711 = vsub.f32 %v548, %v677
      %v712 = vsub.f32 %v462, %v676
      %v713 = vsub.f32 %v551, %v677
      %v714 = vsub.f32 %v464, %v676
      %v715 = vsub.f32 %v553, %v677
      %v716 = vsub.f32 %v467, %v676
      %v717 = vsub.f32 %v556, %v677
      %v718 = vsub.f32 %v469, %v676
      %v719 = vsub.f32 %v558, %v677
      %v720 = vsub.f32 %v472, %v676
      %v721 = vsub.f32 %v561, %v677
      %v722 = vsub.f32 %v474, %v676
      %v723 = vsub.f32 %v563, %v677
      %v724 = vsub.f32 %v477, %v676
      %v725 = vsub.f32 %v566, %v677
      %v726 = vsub.f32 %v479, %v676
      %v727 = vsub.f32 %v568, %v677
      %v728 = vsub.f32 %v482, %v676
      %v729 = vsub.f32 %v571, %v677
      %v730 = vsub.f32 %v484, %v676
      %v731 = vsub.f32 %v573, %v677
      %v732 = vsub.f32 %v487, %v676
      %v733 = vsub.f32 %v576, %v677
      %v734 = vsub.f32 %v489, %v676
      %v735 = vsub.f32 %v578, %v677
      %v736 = vsub.f32 %v492, %v676
      %v737 = vsub.f32 %v581, %v677
      %v738 = vsub.f32 %v494, %v676
      %v739 = vsub.f32 %v583, %v677
      %v740 = vsub.f32 %v497, %v676
      %v741 = vsub.f32 %v586, %v677
      %v742 = vsub.f32 %v499, %v676
      %v743 = vsub.f32 %v588, %v677
      %v744 = vmul.f32 %v680, 1.442695
      %v745 = vpow.pop %v744
      %v746 = vmul.f32 %v681, 1.442695
      %v747 = vpow.pop %v746
      %v748 = vmul.f32 %v682, 1.442695
      %v749 = vpow.pop %v748
      %v750 = vmul.f32 %v683, 1.442695
      %v751 = vpow.pop %v750
      %v752 = vmul.f32 %v684, 1.442695
      %v753 = vpow.pop %v752
      %v754 = vmul.f32 %v685, 1.442695
      %v755 = vpow.pop %v754
      %v756 = vmul.f32 %v686, 1.442695
      %v757 = vpow.pop %v756
      %v758 = vmul.f32 %v687, 1.442695
      %v759 = vpow.pop %v758
      %v760 = vmul.f32 %v688, 1.442695
      %v761 = vpow.pop %v760
      %v762 = vmul.f32 %v689, 1.442695
      %v763 = vpow.pop %v762
      %v764 = vmul.f32 %v690, 1.442695
      %v765 = vpow.pop %v764
      %v766 = vmul.f32 %v691, 1.442695
      %v767 = vpow.pop %v766
      %v768 = vmul.f32 %v692, 1.442695
      %v769 = vpow.pop %v768
      %v770 = vmul.f32 %v693, 1.442695
      %v771 = vpow.pop %v770
      %v772 = vmul.f32 %v694, 1.442695
      %v773 = vpow.pop %v772
      %v774 = vmul.f32 %v695, 1.442695
      %v775 = vpow.pop %v774
      %v776 = vmul.f32 %v696, 1.442695
      %v777 = vpow.pop %v776
      %v778 = vmul.f32 %v697, 1.442695
      %v779 = vpow.pop %v778
      %v780 = vmul.f32 %v698, 1.442695
      %v781 = vpow.pop %v780
      %v782 = vmul.f32 %v699, 1.442695
      %v783 = vpow.pop %v782
      %v784 = vmul.f32 %v700, 1.442695
      %v785 = vpow.pop %v784
      %v786 = vmul.f32 %v701, 1.442695
      %v787 = vpow.pop %v786
      %v788 = vmul.f32 %v702, 1.442695
      %v789 = vpow.pop %v788
      %v790 = vmul.f32 %v703, 1.442695
      %v791 = vpow.pop %v790
      %v792 = vmul.f32 %v704, 1.442695
      %v793 = vpow.pop %v792
      %v794 = vmul.f32 %v705, 1.442695
      %v795 = vpow.pop %v794
      %v796 = vmul.f32 %v706, 1.442695
      %v797 = vpow.pop %v796
      %v798 = vmul.f32 %v707, 1.442695
      %v799 = vpow.pop %v798
      %v800 = vmul.f32 %v708, 1.442695
      %v801 = vpow.pop %v800
      %v802 = vmul.f32 %v709, 1.442695
      %v803 = vpow.pop %v802
      %v804 = vmul.f32 %v710, 1.442695
      %v805 = vpow.pop %v804
      %v806 = vmul.f32 %v711, 1.442695
      %v807 = vpow.pop %v806
      %v808 = vmul.f32 %v712, 1.442695
      %v809 = vpow.pop %v808
      %v810 = vmul.f32 %v713, 1.442695
      %v811 = vpow.pop %v810
      %v812 = vmul.f32 %v714, 1.442695
      %v813 = vpow.pop %v812
      %v814 = vmul.f32 %v715, 1.442695
      %v815 = vpow.pop %v814
      %v816 = vmul.f32 %v716, 1.442695
      %v817 = vpow.pop %v816
      %v818 = vmul.f32 %v717, 1.442695
      %v819 = vpow.pop %v818
      %v820 = vmul.f32 %v718, 1.442695
      %v821 = vpow.pop %v820
      %v822 = vmul.f32 %v719, 1.442695
      %v823 = vpow.pop %v822
      %v824 = vmul.f32 %v720, 1.442695
      %v825 = vpow.pop %v824
      %v826 = vmul.f32 %v721, 1.442695
      %v827 = vpow.pop %v826
      %v828 = vmul.f32 %v722, 1.442695
      %v829 = vpow.pop %v828
      %v830 = vmul.f32 %v723, 1.442695
      %v831 = vpow.pop %v830
      %v832 = vmul.f32 %v724, 1.442695
      %v833 = vpow.pop %v832
      %v834 = vmul.f32 %v725, 1.442695
      %v835 = vpow.pop %v834
      %v836 = vmul.f32 %v726, 1.442695
      %v837 = vpow.pop %v836
      %v838 = vmul.f32 %v727, 1.442695
      %v839 = vpow.pop %v838
      %v840 = vmul.f32 %v728, 1.442695
      %v841 = vpow.pop %v840
      %v842 = vmul.f32 %v729, 1.442695
      %v843 = vpow.pop %v842
      %v844 = vmul.f32 %v730, 1.442695
      %v845 = vpow.pop %v844
      %v846 = vmul.f32 %v731, 1.442695
      %v847 = vpow.pop %v846
      %v848 = vmul.f32 %v732, 1.442695
      %v849 = vpow.pop %v848
      %v850 = vmul.f32 %v733, 1.442695
      %v851 = vpow.pop %v850
      %v852 = vmul.f32 %v734, 1.442695
      %v853 = vpow.pop %v852
      %v854 = vmul.f32 %v735, 1.442695
      %v855 = vpow.pop %v854
      %v856 = vmul.f32 %v736, 1.442695
      %v857 = vpow.pop %v856
      %v858 = vmul.f32 %v737, 1.442695
      %v859 = vpow.pop %v858
      %v860 = vmul.f32 %v738, 1.442695
      %v861 = vpow.pop %v860
      %v862 = vmul.f32 %v739, 1.442695
      %v863 = vpow.pop %v862
      %v864 = vmul.f32 %v740, 1.442695
      %v865 = vpow.pop %v864
      %v866 = vmul.f32 %v741, 1.442695
      %v867 = vpow.pop %v866
      %v868 = vmul.f32 %v742, 1.442695
      %v869 = vpow.pop %v868
      %v870 = vmul.f32 %v743, 1.442695
      %v871 = vpow.pop %v870
      %v872 = vpack.c.bf16 %v749, %v745
      %v873 = vpack.c.bf16 %v751, %v747
      %v874 = vpack.c.bf16 %v757, %v753
      %v875 = vpack.c.bf16 %v759, %v755
      %v876 = vpack.c.bf16 %v765, %v761
      %v877 = vpack.c.bf16 %v767, %v763
      %v878 = vpack.c.bf16 %v773, %v769
      %v879 = vpack.c.bf16 %v775, %v771
      %v880 = vpack.c.bf16 %v781, %v777
      %v881 = vpack.c.bf16 %v783, %v779
      %v882 = vpack.c.bf16 %v789, %v785
      %v883 = vpack.c.bf16 %v791, %v787
      %v884 = vpack.c.bf16 %v797, %v793
      %v885 = vpack.c.bf16 %v799, %v795
      %v886 = vpack.c.bf16 %v805, %v801
      %v887 = vpack.c.bf16 %v807, %v803
      %v888 = vpack.c.bf16 %v813, %v809
      %v889 = vpack.c.bf16 %v815, %v811
      %v890 = vpack.c.bf16 %v821, %v817
      %v891 = vpack.c.bf16 %v823, %v819
      %v892 = vpack.c.bf16 %v829, %v825
      %v893 = vpack.c.bf16 %v831, %v827
      %v894 = vpack.c.bf16 %v837, %v833
      %v895 = vpack.c.bf16 %v839, %v835
      %v896 = vpack.c.bf16 %v845, %v841
      %v897 = vpack.c.bf16 %v847, %v843
      %v898 = vpack.c.bf16 %v853, %v849
      %v899 = vpack.c.bf16 %v855, %v851
      %v900 = vpack.c.bf16 %v861, %v857
      %v901 = vpack.c.bf16 %v863, %v859
      %v902 = vpack.c.bf16 %v869, %v865
      %v903 = vpack.c.bf16 %v871, %v867
      %v905 = vunpack.c.l.b16 %v315
      %v906 = vunpack.c.h.b16 %v315
      %v907 = vpack.c.b16 %v905, %v905
      %v908 = vpack.c.b16 %v906, %v906
      %911 = vmatpush.bf16.msra.mxu0 %v886
      %912 = vmatpush.bf16.msra.mxu0 %v884
      %913 = vmatpush.bf16.msra.mxu0 %v882
      %914 = vmatpush.bf16.msra.mxu0 %v880
      %915 = vmatpush.bf16.msra.mxu0 %v878
      %916 = vmatpush.bf16.msra.mxu0 %v876
      %917 = vmatpush.bf16.msra.mxu0 %v874
      %918 = vmatpush.bf16.msra.mxu0 %v872
      %919 = vmatmul.bf16.gmra.mxu0 %v907
      %v920 = vpop.f32.mrf.mxu0
      %v921 = vadd.f32 0.0, %v920
      %v922 = vpop.f32.mrf.mxu0
      %923 = vdwg.mxu0
      %924 = vmatpush.bf16.msra.mxu0 %v902
      %925 = vmatpush.bf16.msra.mxu0 %v900
      %926 = vmatpush.bf16.msra.mxu0 %v898
      %927 = vmatpush.bf16.msra.mxu0 %v896
      %928 = vmatpush.bf16.msra.mxu0 %v894
      %929 = vmatpush.bf16.msra.mxu0 %v892
      %930 = vmatpush.bf16.msra.mxu0 %v890
      %931 = vmatpush.bf16.msra.mxu0 %v888
      %932 = vmatmul.bf16.gmra.mxu0 %v908
      %v933 = vpop.f32.mrf.mxu0
      %v934 = vadd.f32 %v921, %v933
      %v935 = vpop.f32.mrf.mxu0
      %936 = vdwg.mxu0
      %937 = vmatpush.bf16.msra.mxu0 %v887
      %938 = vmatpush.bf16.msra.mxu0 %v885
      %939 = vmatpush.bf16.msra.mxu0 %v883
      %940 = vmatpush.bf16.msra.mxu0 %v881
      %941 = vmatpush.bf16.msra.mxu0 %v879
      %942 = vmatpush.bf16.msra.mxu0 %v877
      %943 = vmatpush.bf16.msra.mxu0 %v875
      %944 = vmatpush.bf16.msra.mxu0 %v873
      %945 = vmatmul.bf16.gmra.mxu0 %v907
      %v946 = vpop.f32.mrf.mxu0
      %v947 = vadd.f32 0.0, %v946
      %v948 = vpop.f32.mrf.mxu0
      %949 = vdwg.mxu0
      %950 = vmatpush.bf16.msra.mxu0 %v903
      %951 = vmatpush.bf16.msra.mxu0 %v901
      %952 = vmatpush.bf16.msra.mxu0 %v899
      %953 = vmatpush.bf16.msra.mxu0 %v897
      %954 = vmatpush.bf16.msra.mxu0 %v895
      %955 = vmatpush.bf16.msra.mxu0 %v893
      %956 = vmatpush.bf16.msra.mxu0 %v891
      %957 = vmatpush.bf16.msra.mxu0 %v889
      %958 = vmatmul.bf16.gmra.mxu0 %v908
      %v959 = vpop.f32.mrf.mxu0
      %v960 = vadd.f32 %v947, %v959
      %v961 = vpop.f32.mrf.mxu0
      %962 = vdwg.mxu0
      %v963 = vld [vmem:[#allocation3] sm:$0x1f]
      %v964 = vld [vmem:[#allocation3 + $0x8] sm:$0x1f]
      %v966 = vperm.slane %v674, 0
      %v967 = vperm.slane %v674, 1
      %v970 = vmul.f32 %v966, %v963
      %v971 = vmul.f32 %v967, %v964
      %v972 = vadd.f32 %v970, %v934
      %v973 = vadd.f32 %v971, %v960
      %974 = vst [vmem:[#allocation3] sm:$0x1f] %v972
      %975 = vst [vmem:[#allocation3 + $0x8] sm:$0x1f] %v973
      %v976 = vlaneseq
      %vm977 = vcmp.ge.s32.totalorder %v976, 0
      %vm978 = vcmp.lt.s32.totalorder %v976, 256
      %vm979 = vmand %vm977, %vm978
      %980 = vst.msk [vmem:[#allocation2] sm:$0x3] %vm979, %v671
      // Predicated region
      $region37: #{msffm_attention.1} parent=31 // pred_check
        %p981 = pneg %p290
      $region38: #{msffm_attention.1} parent=31 // pred_check_branch
        %983 = sbr.rel (%p981) target = $region40
      $region39: #{msffm_attention.1} parent=31 // pred_region
        %v984 = vld [vmem:[#allocation3] sm:$0x1f]
        %v985 = vld [vmem:[#allocation3 + $0x8] sm:$0x1f]
        %v986 = vrcp.pop %v984
        %v987 = vrcp.pop %v985
        %v988 = vld [vmem:[%s277] sm:$0x1f]
        %v989 = vld [vmem:[%s277 + $0x8] sm:$0x1f]
        %v990 = vperm.slane %v986, 4
        %v991 = vperm.slane %v987, 4
        %v992 = vmul.f32 %v984, %v990
        %v993 = vmul.f32 %v985, %v991
        %v994 = vadd.f32 %v988, %v992
        %v995 = vadd.f32 %v989, %v993
        %v998 = vrot.slane %v995, 4
        %vm999 = vcmask 1043456
        %v1000 = vsel %vm999, %v994, %v998
        %1002 = vst [vmem:[%s287] sm:$0xff] %v1000
      $region40: #{msffm_attention.1} parent=31 // pred_fallthru
        _
      %s1003 = smul.u32 2, %s20
      %p1004 = scmp.lt.s32.totalorder %s19, 1
      %s1005 = scalar_select %p1004, %s19, 1
      %p1006 = scmp.lt.s32.totalorder %s1003, 1
      %s1007 = scalar_select %p1006, %s1003, 1
      %s1008 = smul.addr %s1005, 2
      %s1009 = sadd.s32 %s1007, %s1008
      %s1010 = smul.addr %s1009, 4
      %s1011 = scalar_lea.vmem %s3, %s1010
      // Predicated region
      $region41: #{msffm_attention.1} parent=31 // pred_check
        %p1012 = pneg %p137
      $region42: #{msffm_attention.1} parent=31 // pred_check_branch
        %1014 = sbr.rel (%p1012) target = $region44
      $region43: #{msffm_attention.1} parent=31 // pred_region
        %s1015 = smul.u32 2, %s20
      $region44: #{msffm_attention.1} parent=31 // pred_fallthru
        _
    $region32: #{msffm_attention.1} parent=5 // pred_fallthru
      _
    %p1016 = scmp.le.s32.totalorder 2, %s9
    // Predicated region
    $region45: #{msffm_attention.1} parent=5 // pred_check
      %p1017 = pneg %p1016
    $region46: #{msffm_attention.1} parent=5 // pred_check_branch
      %1019 = sbr.rel (%p1017) target = $region48
    $region47: #{msffm_attention.1} parent=5 // pred_region
      %s1020 = ssub.s32 %s9, 2
      // Predicated region
      $region49: #{msffm_attention.1} parent=47 // pred_check
        %p1021 = pneg %p143
      $region50: #{msffm_attention.1} parent=47 // pred_check_branch
        %1023 = sbr.rel (%p1021) target = $region52
      $region51: #{msffm_attention.1} parent=47 // pred_region
        %s1024 = smul.u32 2, %s23
        %p1025 = scmp.lt.s32.totalorder %s22, 1
        %s1026 = scalar_select %p1025, %s22, 1
        %p1027 = scmp.lt.s32.totalorder %s1024, 1
        %s1028 = scalar_select %p1027, %s1024, 1
        %s1029 = smul.addr %s1026, 2
        %s1030 = sadd.s32 %s1028, %s1029
        %s1031 = smul.addr %s1030, 4
        %s1032 = scalar_lea.vmem %s3, %s1031
      $region52: #{msffm_attention.1} parent=47 // pred_fallthru
        _
    $region48: #{msffm_attention.1} parent=5 // pred_fallthru
      _
  $region6: #{msffm_attention.1} parent=0 // loop_footer
    %s13 = sadd.s32 1, %s9
  $region7: #{msffm_attention.1} parent=0 // loop_footer_branch
    %8 = sbr.rel target = $region3
  $region8: #{msffm_attention.1} parent=0 // loop_exit
    _

</llo_original>
